<compile_context>
chip_gen: v5e
topology: v5e:2x2
jax: 0.10.0
libtpu: 0.0.40
codegen_flags: <defaults>
</compile_context>

<pallas_src>
import functools

import jax
import jax.numpy as jnp
from jax.experimental import pallas as pl
from jax.experimental.pallas import tpu as pltpu


def gin_kernel(C, eps_ref, xe_ref, w1_ref, b1_ref, wa_ref, ba_ref,
               wb_ref, bb_ref, out_ref, h_ref):
    L, Bt, Kp = xe_ref.shape            # Kp lanes hold [x | emb | zero pad]
    Cp = out_ref.shape[-1]
    Hp = wa_ref.shape[1]
    rows = L * Bt

    xe2 = xe_ref[...].reshape(rows, Kp)               # L outer, B inner (f32)

    # transform_before_conv: Linear(2C -> C) as ONE bf16 matmul on the packed
    # [x | emb] lanes (f32 accumulate + f32 bias).
    t2 = (jnp.dot(xe2.astype(jnp.bfloat16), w1_ref[...],
                  preferred_element_type=jnp.float32)
          + b1_ref[...])                              # (rows, Cp) f32

    # (1 + eps) * x : x lives in lanes [0, C) of the packed tile.
    lane = jax.lax.broadcasted_iota(jnp.int32, (rows, Kp), 1)
    x2 = jnp.where(lane < C, xe2, 0.0)
    if Kp > Cp:
        x2 = x2[:, :Cp]                               # lane-tile aligned slice
    eps = eps_ref[0, 0]
    h_ref[...] = (1.0 + eps) * x2                     # residual, (rows, Cp)

    # custom_propagate: prop[l] = t[l-1] + t[l+1], zero-padded along L.
    # With L-outer flattening and Bt % 8 == 0 these are sublane-aligned
    # slice-accumulates into the scratch (no full shifted copies).
    if L > 1:
        nr = rows - Bt
        h_ref[pl.ds(Bt, nr), :] += t2[:nr, :]         # t[l-1] -> rows of l >= 1
        h_ref[pl.ds(0, nr), :] += t2[Bt:, :]          # t[l+1] -> rows of l <= L-2

    # self.nn: Linear(C->H) -> ReLU  (bf16 MXU, f32 accumulate, f32 ReLU)
    a2 = jnp.maximum(
        jnp.dot(h_ref[...].astype(jnp.bfloat16), wa_ref[...],
                preferred_element_type=jnp.float32) + ba_ref[...],
        0.0)                                          # (rows, Hp) f32

    # out.sum(0) folded BEFORE the last Linear (wb/bb shared across L):
    #   sum_L(a @ wb + bb) == (sum_L a) @ wb + L * bb
    a_sum = a2.reshape(L, Bt, Hp).sum(axis=0)         # (Bt, Hp) f32
    out_ref[...] = (jnp.dot(a_sum, wb_ref[...],       # tiny matmul, kept f32
                            preferred_element_type=jnp.float32)
                    + L * bb_ref[...])                # (Bt, Cp) f32


def _round_up(n, m):
    return ((n + m - 1) // m) * m


def _pad2(a, r, c):
    return jnp.pad(a, ((0, r - a.shape[0]), (0, c - a.shape[1])))


def _pick_bt(B, L, Kp, Cp, Hp, budget_bytes=36 << 20):
    """Largest multiple-of-8 batch tile whose double-buffered blocks plus live
    f32 intermediates fit the VMEM budget (sized so the kernel also fits
    v7x's 64 MiB VMEM per TensorCore)."""
    b8 = _round_up(max(B, 1), 8)
    bt = 8
    for cand in (8, 16, 32, 64, 128, 256, 512, 1024):
        rows = L * cand
        need = 4 * (2 * rows * Kp               # double-buffered xe blocks
                    + 2 * cand * Cp             # double-buffered out blocks
                    + rows * Cp                 # h scratch
                    + 4 * rows * max(Cp, Hp))   # live f32 temps (t2/a2/casts)
        if need > budget_bytes:
            break
        bt = cand
        if cand >= b8:
            break
    # v7x has two TensorCores: keep >= 2 grid steps whenever the batch allows
    # so the "parallel" batch axis can actually shard across them.
    while bt > 8 and pl.cdiv(b8, bt) < 2:
        bt //= 2
    return bt


@jax.jit
def custom_gin_conv(x, atomic_type, params):
    """x: (L, B, C) f32, atomic_type: (L, B) int32 -> (B, C) f32."""
    L, B, C = x.shape
    H = params["wa"].shape[1]
    Cp = _round_up(C, 128)
    Hp = _round_up(H, 128)
    Kp = _round_up(2 * C, 128)

    Bt = _pick_bt(B, L, Kp, Cp, Hp)
    Bp = _round_up(B, Bt)
    nb = Bp // Bt

    # TODO(synk): embedding gather stays in JAX glue (data-dependent gather);
    # an in-kernel gather of the tiny table only pays once the kernel is no
    # longer HBM-bound.
    emb = params["embedding"][atomic_type]                        # (L, B, C)

    # Pack [x | emb] into ONE lane-dense f32 stream (halves activation DMA and
    # first-layer MXU work vs. two separately padded streams).
    xe = jnp.concatenate([x, emb], axis=-1)                       # (L, B, 2C)
    xe_p = jnp.pad(xe, ((0, 0), (0, Bp - B), (0, Kp - 2 * C)))    # (L, Bp, Kp)

    # Big-matmul weights in bf16 (MXU inputs, f32 accumulate); biases f32;
    # the tiny final matmul keeps wb in f32 for accuracy.
    w1 = jnp.concatenate([params["w1x"], params["w1e"]], axis=0)  # (2C, C)
    w1 = _pad2(w1, Kp, Cp).astype(jnp.bfloat16)
    b1 = _pad2(params["b1"], 1, Cp)
    wa = _pad2(params["wa"], Cp, Hp).astype(jnp.bfloat16)
    ba = _pad2(params["ba"], 1, Hp)
    wb = _pad2(params["wb"], Hp, Cp)                              # f32
    bb = _pad2(params["bb"], 1, Cp)

    eps = params["eps"].reshape(1, 1).astype(jnp.float32)         # SMEM scalar

    out_p = pl.pallas_call(
        functools.partial(gin_kernel, C),
        out_shape=jax.ShapeDtypeStruct((Bp, Cp), jnp.float32),
        grid=(nb,),
        in_specs=[
            pl.BlockSpec(memory_space=pltpu.MemorySpace.SMEM),    # eps
            pl.BlockSpec((L, Bt, Kp), lambda b: (0, b, 0)),       # xe (packed)
            pl.BlockSpec((Kp, Cp), lambda b: (0, 0)),             # w1
            pl.BlockSpec((1, Cp), lambda b: (0, 0)),              # b1
            pl.BlockSpec((Cp, Hp), lambda b: (0, 0)),             # wa
            pl.BlockSpec((1, Hp), lambda b: (0, 0)),              # ba
            pl.BlockSpec((Hp, Cp), lambda b: (0, 0)),             # wb (f32)
            pl.BlockSpec((1, Cp), lambda b: (0, 0)),              # bb
        ],
        out_specs=pl.BlockSpec((Bt, Cp), lambda b: (b, 0)),
        scratch_shapes=[pltpu.VMEM((L * Bt, Cp), jnp.float32)],
        compiler_params=pltpu.CompilerParams(
            dimension_semantics=("parallel",),
            # v5e's default scoped-VMEM limit is 16 MiB; raise it so larger
            # batch tiles compile (still under v7x's 64 MiB physical VMEM).
            vmem_limit_bytes=48 << 20),
    )(eps, xe_p, w1, b1, wa, ba, wb, bb)

    return out_p[:B, :C]


def reference(x, atomic_type, params):
    """Pure-JAX f32 reference mirroring the PyTorch forward semantics."""
    emb = params["embedding"][atomic_type]
    xc = jnp.concatenate([x, emb], axis=-1)                       # (L, B, 2C)
    W1 = jnp.concatenate([params["w1x"], params["w1e"]], axis=0)  # (2C, C)
    t = xc @ W1 + params["b1"]
    t_up = jnp.concatenate([jnp.zeros_like(t[:1]), t[:-1]], axis=0)
    t_dn = jnp.concatenate([t[1:], jnp.zeros_like(t[:1])], axis=0)
    prop = t_up + t_dn                                            # custom_propagate
    h = (1.0 + params["eps"][0]) * x + prop
    a = jax.nn.relu(h @ params["wa"] + params["ba"])
    y = a @ params["wb"] + params["bb"]
    return y.sum(0)


def init_params(key, in_channels, hidden, num_embeddings):
    C, H = in_channels, hidden
    ks = jax.random.split(key, 8)

    def lin(kw, kb, fan_in, fan_out):
        bound = 1.0 / jnp.sqrt(fan_in)
        w = jax.random.uniform(kw, (fan_in, fan_out), jnp.float32, -bound, bound)
        b = jax.random.uniform(kb, (1, fan_out), jnp.float32, -bound, bound)
        return w, b

    # transform_before_conv: Linear(2C -> C), split into x-half and emb-half
    w1, b1 = lin(ks[0], ks[1], 2 * C, C)
    w1x, w1e = w1[:C], w1[C:]
    # self.nn MLP
    wa, ba = lin(ks[2], ks[3], C, H)
    wb, bb = lin(ks[4], ks[5], H, C)
    return {
        "eps": jnp.ones((1,), jnp.float32),                               # torch.ones(1)
        "embedding": jax.random.normal(ks[6], (num_embeddings, C), jnp.float32),
        "w1x": w1x, "w1e": w1e, "b1": b1,
        "wa": wa, "ba": ba, "wb": wb, "bb": bb,
    }


if __name__ == "__main__":
    L, B, C, H = 8, 2, 32, 32
    num_embeddings = 100

    key = jax.random.PRNGKey(0)
    k_x, k_at, k_p = jax.random.split(key, 3)

    x = jax.random.normal(k_x, (L, B, C), jnp.float32)
    atomic_type = jax.random.randint(k_at, (L, B), 0, num_embeddings, jnp.int32)
    params = init_params(k_p, C, H, num_embeddings)

    out = jax.block_until_ready(custom_gin_conv(x, atomic_type, params))
    ref = jax.block_until_ready(reference(x, atomic_type, params))

    assert out.shape == (B, C), out.shape
    # bf16 matmul inputs (f32 accumulate) -> loosened tolerance vs f32 reference.
    assert jnp.allclose(out, ref, rtol=5e-2, atol=5e-2), \
        float(jnp.max(jnp.abs(out - ref)))
    print("KERNEL_OK")
</pallas_src>

<mosaic_0001>
module attributes {stable_mosaic.version = 11 : i64} {
  func.func @gin_kernel(%arg0: i32, %arg1: memref<1x1xf32, #tpu.memory_space<smem>>, %arg2: memref<8x8x128xf32, #tpu.memory_space<vmem>>, %arg3: memref<128x128xbf16, #tpu.memory_space<vmem>>, %arg4: memref<1x128xf32, #tpu.memory_space<vmem>>, %arg5: memref<128x128xbf16, #tpu.memory_space<vmem>>, %arg6: memref<1x128xf32, #tpu.memory_space<vmem>>, %arg7: memref<128x128xf32, #tpu.memory_space<vmem>>, %arg8: memref<1x128xf32, #tpu.memory_space<vmem>>, %arg9: memref<8x128xf32, #tpu.memory_space<vmem>>, %arg10: memref<64x128xf32, #tpu.memory_space<vmem>>) attributes {dimension_semantics = [#tpu.dimension_semantics<parallel>], iteration_bounds = array<i64: 1>, scalar_prefetch = 0 : i64, scratch_operands = 1 : i64, tpu.core_type = #tpu.core_type<tc>, window_params = [{transform_indices = @transform_0, window_bounds = array<i64: 1, 1>}, {transform_indices = @transform_1, window_bounds = array<i64: 8, 8, 128>}, {pipeline_mode = #tpu.pipeline_mode<synchronous>, transform_indices = @transform_2, window_bounds = array<i64: 128, 128>}, {pipeline_mode = #tpu.pipeline_mode<synchronous>, transform_indices = @transform_3, window_bounds = array<i64: 1, 128>}, {pipeline_mode = #tpu.pipeline_mode<synchronous>, transform_indices = @transform_4, window_bounds = array<i64: 128, 128>}, {pipeline_mode = #tpu.pipeline_mode<synchronous>, transform_indices = @transform_5, window_bounds = array<i64: 1, 128>}, {pipeline_mode = #tpu.pipeline_mode<synchronous>, transform_indices = @transform_6, window_bounds = array<i64: 128, 128>}, {pipeline_mode = #tpu.pipeline_mode<synchronous>, transform_indices = @transform_7, window_bounds = array<i64: 1, 128>}, {transform_indices = @transform_8, window_bounds = array<i64: 8, 128>}]} {
    %c0 = arith.constant 0 : index
    %c0_0 = arith.constant 0 : index
    %c0_1 = arith.constant 0 : index
    %0 = vector.load %arg2[%c0, %c0_0, %c0_1] : memref<8x8x128xf32, #tpu.memory_space<vmem>>, vector<8x8x128xf32>
    %1 = vector.shape_cast %0 : vector<8x8x128xf32> to vector<64x128xf32>
    %2 = arith.truncf %1 : vector<64x128xf32> to vector<64x128xbf16>
    %c0_2 = arith.constant 0 : index
    %c0_3 = arith.constant 0 : index
    %3 = vector.load %arg3[%c0_2, %c0_3] : memref<128x128xbf16, #tpu.memory_space<vmem>>, vector<128x128xbf16>
    %cst = arith.constant dense<0.000000e+00> : vector<64x128xf32>
    %4 = tpu.matmul %2, %3, %cst {dimension_numbers = #tpu.dot_dimension_numbers<[1], [0], [0], [1], [0, 0, 1, 1], [], []>} : vector<64x128xbf16>, vector<128x128xbf16>, vector<64x128xf32> -> vector<64x128xf32>
    %c0_4 = arith.constant 0 : index
    %c0_5 = arith.constant 0 : index
    %5 = vector.load %arg4[%c0_4, %c0_5] : memref<1x128xf32, #tpu.memory_space<vmem>>, vector<1x128xf32>
    %6 = vector.broadcast %5 : vector<1x128xf32> to vector<64x128xf32>
    %7 = arith.addf %4, %6 : vector<64x128xf32>
    %8 = tpu.iota {dimensions = array<i32: 1>} : vector<64x128xi32>
    %c32_i32 = arith.constant 32 : i32
    %9 = vector.broadcast %c32_i32 : i32 to vector<64x128xi32>
    %10 = arith.cmpi slt, %8, %9 : vector<64x128xi32>
    %cst_6 = arith.constant 0.000000e+00 : f32
    %11 = vector.broadcast %cst_6 : f32 to vector<64x128xf32>
    %12 = arith.select %10, %1, %11 : vector<64x128xi1>, vector<64x128xf32>
    %c0_7 = arith.constant 0 : index
    %c0_8 = arith.constant 0 : index
    %13 = memref.load %arg1[%c0_7, %c0_8] : memref<1x1xf32, #tpu.memory_space<smem>>
    %cst_9 = arith.constant 1.000000e+00 : f32
    %14 = arith.addf %cst_9, %13 : f32
    %15 = vector.broadcast %14 : f32 to vector<64x128xf32>
    %16 = arith.mulf %15, %12 : vector<64x128xf32>
    %c0_10 = arith.constant 0 : index
    %c0_11 = arith.constant 0 : index
    %17 = vector.load %arg10[%c0_10, %c0_11] : memref<64x128xf32, #tpu.memory_space<vmem>>, vector<64x128xf32>
    tpu.vector_store %arg10[%c0_10, %c0_11], %16 {strides = array<i32>} : memref<64x128xf32, #tpu.memory_space<vmem>>, vector<64x128xf32>,
    %c8 = arith.constant 8 : index
    %c0_12 = arith.constant 0 : index
    %18 = vector.load %arg10[%c8, %c0_12] : memref<64x128xf32, #tpu.memory_space<vmem>>, vector<56x128xf32>
    %19 = vector.extract_strided_slice %7 {offsets = [0, 0], sizes = [56, 128], strides = [1, 1]} : vector<64x128xf32> to vector<56x128xf32>
    %20 = arith.addf %18, %19 : vector<56x128xf32>
    %c8_13 = arith.constant 8 : index
    %c0_14 = arith.constant 0 : index
    %21 = vector.load %arg10[%c8_13, %c0_14] : memref<64x128xf32, #tpu.memory_space<vmem>>, vector<56x128xf32>
    tpu.vector_store %arg10[%c8_13, %c0_14], %20 {strides = array<i32>} : memref<64x128xf32, #tpu.memory_space<vmem>>, vector<56x128xf32>,
    %c0_15 = arith.constant 0 : index
    %c0_16 = arith.constant 0 : index
    %22 = vector.load %arg10[%c0_15, %c0_16] : memref<64x128xf32, #tpu.memory_space<vmem>>, vector<56x128xf32>
    %23 = vector.extract_strided_slice %7 {offsets = [8, 0], sizes = [56, 128], strides = [1, 1]} : vector<64x128xf32> to vector<56x128xf32>
    %24 = arith.addf %22, %23 : vector<56x128xf32>
    %c0_17 = arith.constant 0 : index
    %c0_18 = arith.constant 0 : index
    %25 = vector.load %arg10[%c0_17, %c0_18] : memref<64x128xf32, #tpu.memory_space<vmem>>, vector<56x128xf32>
    tpu.vector_store %arg10[%c0_17, %c0_18], %24 {strides = array<i32>} : memref<64x128xf32, #tpu.memory_space<vmem>>, vector<56x128xf32>,
    %c0_19 = arith.constant 0 : index
    %c0_20 = arith.constant 0 : index
    %26 = vector.load %arg10[%c0_19, %c0_20] : memref<64x128xf32, #tpu.memory_space<vmem>>, vector<64x128xf32>
    %27 = arith.truncf %26 : vector<64x128xf32> to vector<64x128xbf16>
    %c0_21 = arith.constant 0 : index
    %c0_22 = arith.constant 0 : index
    %28 = vector.load %arg5[%c0_21, %c0_22] : memref<128x128xbf16, #tpu.memory_space<vmem>>, vector<128x128xbf16>
    %cst_23 = arith.constant dense<0.000000e+00> : vector<64x128xf32>
    %29 = tpu.matmul %27, %28, %cst_23 {dimension_numbers = #tpu.dot_dimension_numbers<[1], [0], [0], [1], [0, 0, 1, 1], [], []>} : vector<64x128xbf16>, vector<128x128xbf16>, vector<64x128xf32> -> vector<64x128xf32>
    %c0_24 = arith.constant 0 : index
    %c0_25 = arith.constant 0 : index
    %30 = vector.load %arg6[%c0_24, %c0_25] : memref<1x128xf32, #tpu.memory_space<vmem>>, vector<1x128xf32>
    %31 = vector.broadcast %30 : vector<1x128xf32> to vector<64x128xf32>
    %32 = arith.addf %29, %31 : vector<64x128xf32>
    %cst_26 = arith.constant 0.000000e+00 : f32
    %33 = vector.broadcast %cst_26 : f32 to vector<64x128xf32>
    %34 = arith.maximumf %32, %33 : vector<64x128xf32>
    %35 = vector.shape_cast %34 : vector<64x128xf32> to vector<8x8x128xf32>
    %cst_27 = arith.constant dense<0.000000e+00> : vector<8x128xf32>
    %36 = vector.multi_reduction <add>, %35, %cst_27 [0] : vector<8x8x128xf32> to vector<8x128xf32>
    %c0_28 = arith.constant 0 : index
    %c0_29 = arith.constant 0 : index
    %37 = vector.load %arg7[%c0_28, %c0_29] : memref<128x128xf32, #tpu.memory_space<vmem>>, vector<128x128xf32>
    %cst_30 = arith.constant dense<0.000000e+00> : vector<8x128xf32>
    %38 = tpu.matmul %36, %37, %cst_30 {dimension_numbers = #tpu.dot_dimension_numbers<[1], [0], [0], [1], [0, 0, 1, 1], [], []>} : vector<8x128xf32>, vector<128x128xf32>, vector<8x128xf32> -> vector<8x128xf32>
    %c0_31 = arith.constant 0 : index
    %c0_32 = arith.constant 0 : index
    %39 = vector.load %arg8[%c0_31, %c0_32] : memref<1x128xf32, #tpu.memory_space<vmem>>, vector<1x128xf32>
    %cst_33 = arith.constant 8.000000e+00 : f32
    %40 = vector.broadcast %cst_33 : f32 to vector<1x128xf32>
    %41 = arith.mulf %40, %39 : vector<1x128xf32>
    %42 = vector.broadcast %41 : vector<1x128xf32> to vector<8x128xf32>
    %43 = arith.addf %38, %42 : vector<8x128xf32>
    %c0_34 = arith.constant 0 : index
    %c0_35 = arith.constant 0 : index
    %44 = vector.load %arg9[%c0_34, %c0_35] : memref<8x128xf32, #tpu.memory_space<vmem>>, vector<8x128xf32>
    tpu.vector_store %arg9[%c0_34, %c0_35], %43 {strides = array<i32>} : memref<8x128xf32, #tpu.memory_space<vmem>>, vector<8x128xf32>,
    return
  }
  func.func @transform_0(%arg0: i32) -> (i32, i32) {
    %c0_i32 = arith.constant 0 : i32
    %c0_i32_0 = arith.constant 0 : i32
    %c0_i32_1 = arith.constant 0 : i32
    return %c0_i32, %c0_i32_0 : i32, i32
  }
  func.func @transform_1(%arg0: i32) -> (i32, i32, i32) {
    %c0_i32 = arith.constant 0 : i32
    %c0_i32_0 = arith.constant 0 : i32
    %c0_i32_1 = arith.constant 0 : i32
    return %c0_i32, %arg0, %c0_i32_0 : i32, i32, i32
  }
  func.func @transform_2(%arg0: i32) -> (i32, i32) {
    %c0_i32 = arith.constant 0 : i32
    %c0_i32_0 = arith.constant 0 : i32
    %c0_i32_1 = arith.constant 0 : i32
    return %c0_i32, %c0_i32_0 : i32, i32
  }
  func.func @transform_3(%arg0: i32) -> (i32, i32) {
    %c0_i32 = arith.constant 0 : i32
    %c0_i32_0 = arith.constant 0 : i32
    %c0_i32_1 = arith.constant 0 : i32
    return %c0_i32, %c0_i32_0 : i32, i32
  }
  func.func @transform_4(%arg0: i32) -> (i32, i32) {
    %c0_i32 = arith.constant 0 : i32
    %c0_i32_0 = arith.constant 0 : i32
    %c0_i32_1 = arith.constant 0 : i32
    return %c0_i32, %c0_i32_0 : i32, i32
  }
  func.func @transform_5(%arg0: i32) -> (i32, i32) {
    %c0_i32 = arith.constant 0 : i32
    %c0_i32_0 = arith.constant 0 : i32
    %c0_i32_1 = arith.constant 0 : i32
    return %c0_i32, %c0_i32_0 : i32, i32
  }
  func.func @transform_6(%arg0: i32) -> (i32, i32) {
    %c0_i32 = arith.constant 0 : i32
    %c0_i32_0 = arith.constant 0 : i32
    %c0_i32_1 = arith.constant 0 : i32
    return %c0_i32, %c0_i32_0 : i32, i32
  }
  func.func @transform_7(%arg0: i32) -> (i32, i32) {
    %c0_i32 = arith.constant 0 : i32
    %c0_i32_0 = arith.constant 0 : i32
    %c0_i32_1 = arith.constant 0 : i32
    return %c0_i32, %c0_i32_0 : i32, i32
  }
  func.func @transform_8(%arg0: i32) -> (i32, i32) {
    %c0_i32 = arith.constant 0 : i32
    %c0_i32_0 = arith.constant 0 : i32
    return %arg0, %c0_i32 : i32, i32
  }
}

</mosaic_0001>

<llo_original>
// kernel: custom_gin_conv.1
$region0: #{custom_gin_conv.1}
  #allocation0 [shape = 'u32[]', space=smem, size = 0x4, offset = 0x4, fixed_abs, tag = 'smem constant byte address 0x4 - core index']
  #allocation1 [shape = 'u32[72,128]{1,0:T(1,128)}', space=vmem, size = 0x9000, scoped, tag = 'internal scratch']
  #allocation2 [shape = 'f32[64,128]{1,0:T(8,128)}', space=vmem, size = 0x8000, scoped, tag = 'scratch operand']
  #allocation3 [shape = 'f32[1,1]{1,0:T(1,128)S(6)}', space=smem, size = 0x200, scoped, tag = 'scoped memory for custom_gin_conv.1']
  %s0 = inlined_call_operand.<no memory space> [shape: f32[1,1], index: 0, kind: input, shape index: {}]
  %s1 = inlined_call_operand.vmem [shape: f32[8,8,128], index: 1, kind: input, shape index: {}]
  %s2 = inlined_call_operand.vmem [shape: bf16[128,128], index: 2, kind: input, shape index: {}]
  %s3 = inlined_call_operand.vmem [shape: f32[1,128], index: 3, kind: input, shape index: {}]
  %s4 = inlined_call_operand.vmem [shape: bf16[128,128], index: 4, kind: input, shape index: {}]
  %s5 = inlined_call_operand.vmem [shape: f32[1,128], index: 5, kind: input, shape index: {}]
  %s6 = inlined_call_operand.vmem [shape: f32[128,128], index: 6, kind: input, shape index: {}]
  %s7 = inlined_call_operand.vmem [shape: f32[1,128], index: 7, kind: input, shape index: {}]
  %s8 = inlined_call_operand.vmem [shape: f32[8,128], index: 8, kind: output, shape index: {}]
  %s9 = sld [smem:[#allocation0]]
  $region42: #{custom_gin_conv.1} parent=0
    _
  %s11 = ssub.s32 1, %s9
  %s12 = scalar_select 0, %s11, %s9
  %13 = sst [smem:[#allocation3]] %s0
  // Predicated region
  $region2: #{custom_gin_conv.1} parent=0 // pred_check
    _
  $region3: #{custom_gin_conv.1} parent=0 // pred_check_branch
    %15 = sbr.rel (0) target = $region5
  $region4: #{custom_gin_conv.1} parent=0 // pred_region
    _
  $region5: #{custom_gin_conv.1} parent=0 // pred_fallthru
    _
  // Predicated region
  $region6: #{custom_gin_conv.1} parent=0 // pred_check
    _
  $region7: #{custom_gin_conv.1} parent=0 // pred_check_branch
    %17 = sbr.rel (0) target = $region9
  $region8: #{custom_gin_conv.1} parent=0 // pred_region
    _
  $region9: #{custom_gin_conv.1} parent=0 // pred_fallthru
    _
  // Predicated region
  $region10: #{custom_gin_conv.1} parent=0 // pred_check
    _
  $region11: #{custom_gin_conv.1} parent=0 // pred_check_branch
    %19 = sbr.rel (0) target = $region13
  $region12: #{custom_gin_conv.1} parent=0 // pred_region
    _
  $region13: #{custom_gin_conv.1} parent=0 // pred_fallthru
    _
  // Predicated region
  $region14: #{custom_gin_conv.1} parent=0 // pred_check
    _
  $region15: #{custom_gin_conv.1} parent=0 // pred_check_branch
    %21 = sbr.rel (0) target = $region17
  $region16: #{custom_gin_conv.1} parent=0 // pred_region
    _
  $region17: #{custom_gin_conv.1} parent=0 // pred_fallthru
    _
  // Predicated region
  $region18: #{custom_gin_conv.1} parent=0 // pred_check
    _
  $region19: #{custom_gin_conv.1} parent=0 // pred_check_branch
    %23 = sbr.rel (0) target = $region21
  $region20: #{custom_gin_conv.1} parent=0 // pred_region
    _
  $region21: #{custom_gin_conv.1} parent=0 // pred_fallthru
    _
  // Predicated region
  $region22: #{custom_gin_conv.1} parent=0 // pred_check
    _
  $region23: #{custom_gin_conv.1} parent=0 // pred_check_branch
    %25 = sbr.rel (0) target = $region25
  $region24: #{custom_gin_conv.1} parent=0 // pred_region
    _
  $region25: #{custom_gin_conv.1} parent=0 // pred_fallthru
    _
  // Predicated region
  $region26: #{custom_gin_conv.1} parent=0 // pred_check
    _
  $region27: #{custom_gin_conv.1} parent=0 // pred_check_branch
    %27 = sbr.rel (0) target = $region29
  $region28: #{custom_gin_conv.1} parent=0 // pred_region
    _
  $region29: #{custom_gin_conv.1} parent=0 // pred_fallthru
    _
  // Predicated region
  $region30: #{custom_gin_conv.1} parent=0 // pred_check
    _
  $region31: #{custom_gin_conv.1} parent=0 // pred_check_branch
    %29 = sbr.rel (0) target = $region33
  $region32: #{custom_gin_conv.1} parent=0 // pred_region
    _
  $region33: #{custom_gin_conv.1} parent=0 // pred_fallthru
    _
  %v30 = vld [vmem:[%s1] sm:$0xff]
  %v31 = vld [vmem:[%s1 + $0x8] sm:$0xff]
  %v32 = vld [vmem:[%s1 + $0x10] sm:$0xff]
  %v33 = vld [vmem:[%s1 + $0x18] sm:$0xff]
  %v34 = vld [vmem:[%s1 + $0x20] sm:$0xff]
  %v35 = vld [vmem:[%s1 + $0x28] sm:$0xff]
  %v36 = vld [vmem:[%s1 + $0x30] sm:$0xff]
  %v37 = vld [vmem:[%s1 + $0x38] sm:$0xff]
  %v38 = vpack.c.bf16 %v31, %v30
  %v39 = vpack.c.bf16 %v33, %v32
  %v40 = vpack.c.bf16 %v35, %v34
  %v41 = vpack.c.bf16 %v37, %v36
  %v42 = vld [vmem:[%s2] sm:$0xf]
  %v43 = vld [vmem:[%s2 + $0x4] sm:$0xf]
  %v44 = vld [vmem:[%s2 + $0x8] sm:$0xf]
  %v45 = vld [vmem:[%s2 + $0xc] sm:$0xf]
  %v46 = vld [vmem:[%s2 + $0x10] sm:$0xf]
  %v47 = vld [vmem:[%s2 + $0x14] sm:$0xf]
  %v48 = vld [vmem:[%s2 + $0x18] sm:$0xf]
  %v49 = vld [vmem:[%s2 + $0x1c] sm:$0xf]
  %v50 = vld [vmem:[%s2 + $0x20] sm:$0xf]
  %v51 = vld [vmem:[%s2 + $0x24] sm:$0xf]
  %v52 = vld [vmem:[%s2 + $0x28] sm:$0xf]
  %v53 = vld [vmem:[%s2 + $0x2c] sm:$0xf]
  %v54 = vld [vmem:[%s2 + $0x30] sm:$0xf]
  %v55 = vld [vmem:[%s2 + $0x34] sm:$0xf]
  %v56 = vld [vmem:[%s2 + $0x38] sm:$0xf]
  %v57 = vld [vmem:[%s2 + $0x3c] sm:$0xf]
  %v58 = vld [vmem:[%s3] sm:$0x1]
  %v60 = vperm.slane %v58, 0
  %v78 = vunpack.c.l.b16 %v42
  %v79 = vunpack.c.l.b16 %v43
  %v80 = vunpack.c.l.b16 %v44
  %v81 = vunpack.c.l.b16 %v45
  %v82 = vunpack.c.l.b16 %v46
  %v83 = vunpack.c.l.b16 %v47
  %v84 = vunpack.c.l.b16 %v48
  %v85 = vunpack.c.l.b16 %v49
  %v86 = vunpack.c.l.b16 %v50
  %v87 = vunpack.c.l.b16 %v51
  %v88 = vunpack.c.l.b16 %v52
  %v89 = vunpack.c.l.b16 %v53
  %v90 = vunpack.c.l.b16 %v54
  %v91 = vunpack.c.l.b16 %v55
  %v92 = vunpack.c.l.b16 %v56
  %v93 = vunpack.c.l.b16 %v57
  %v94 = vpack.c.b16 %v79, %v78
  %v95 = vpack.c.b16 %v81, %v80
  %v96 = vpack.c.b16 %v83, %v82
  %v97 = vpack.c.b16 %v85, %v84
  %v98 = vpack.c.b16 %v87, %v86
  %v99 = vpack.c.b16 %v89, %v88
  %v100 = vpack.c.b16 %v91, %v90
  %v101 = vpack.c.b16 %v93, %v92
  %110 = vmatpush.bf16.msra.mxu0 %v101
  %111 = vmatpush.bf16.msra.mxu0 %v100
  %112 = vmatpush.bf16.msra.mxu0 %v99
  %113 = vmatpush.bf16.msra.mxu0 %v98
  %114 = vmatpush.bf16.msra.mxu0 %v97
  %115 = vmatpush.bf16.msra.mxu0 %v96
  %116 = vmatpush.bf16.msra.mxu0 %v95
  %117 = vmatpush.bf16.msra.mxu0 %v94
  %118 = vmatmul.bf16.gmra.mxu0 %v38
  %v119 = vpop.f32.mrf.mxu0
  %v120 = vadd.f32 %v60, %v119
  %v121 = vpop.f32.mrf.mxu0
  %v122 = vadd.f32 %v60, %v121
  %123 = vmatmul.bf16.gmra.mxu0 %v39
  %v124 = vpop.f32.mrf.mxu0
  %v125 = vadd.f32 %v60, %v124
  %v126 = vpop.f32.mrf.mxu0
  %v127 = vadd.f32 %v60, %v126
  %128 = vmatmul.bf16.gmra.mxu0 %v40
  %v129 = vpop.f32.mrf.mxu0
  %v130 = vadd.f32 %v60, %v129
  %v131 = vpop.f32.mrf.mxu0
  %v132 = vadd.f32 %v60, %v131
  %133 = vmatmul.bf16.gmra.mxu0 %v41
  %v134 = vpop.f32.mrf.mxu0
  %v135 = vadd.f32 %v60, %v134
  %v136 = vpop.f32.mrf.mxu0
  %v137 = vadd.f32 %v60, %v136
  %138 = vdwg.mxu0
  %v139 = vlaneseq
  %v140 = vand.u32 %v139, 127
  %vm141 = vcmp.lt.s32.totalorder %v140, 32
  %v142 = vsel %vm141, %v30, 0.0
  %v143 = vsel %vm141, %v31, 0.0
  %v144 = vsel %vm141, %v32, 0.0
  %v145 = vsel %vm141, %v33, 0.0
  %v146 = vsel %vm141, %v34, 0.0
  %v147 = vsel %vm141, %v35, 0.0
  %v148 = vsel %vm141, %v36, 0.0
  %v149 = vsel %vm141, %v37, 0.0
  %s150 = sld [smem:[#allocation3]]
  %s151 = sadd.f32 %s150, 1.0
  %v152 = vstv %s151
  %v153 = vmul.f32 %v152, %v142
  %v154 = vmul.f32 %v152, %v143
  %v155 = vmul.f32 %v152, %v144
  %v156 = vmul.f32 %v152, %v145
  %v157 = vmul.f32 %v152, %v146
  %v158 = vmul.f32 %v152, %v147
  %v159 = vmul.f32 %v152, %v148
  %v160 = vmul.f32 %v152, %v149
  %161 = vst [vmem:[#allocation2] sm:$0xff] %v153
  %162 = vst [vmem:[#allocation2 + $0x8] sm:$0xff] %v154
  %163 = vst [vmem:[#allocation2 + $0x10] sm:$0xff] %v155
  %164 = vst [vmem:[#allocation2 + $0x18] sm:$0xff] %v156
  %165 = vst [vmem:[#allocation2 + $0x20] sm:$0xff] %v157
  %166 = vst [vmem:[#allocation2 + $0x28] sm:$0xff] %v158
  %167 = vst [vmem:[#allocation2 + $0x30] sm:$0xff] %v159
  %168 = vst [vmem:[#allocation2 + $0x38] sm:$0xff] %v160
  %v169 = vld [vmem:[#allocation2 + $0x8] sm:$0xff]
  %v170 = vld [vmem:[#allocation2 + $0x10] sm:$0xff]
  %v171 = vld [vmem:[#allocation2 + $0x18] sm:$0xff]
  %v172 = vld [vmem:[#allocation2 + $0x20] sm:$0xff]
  %v173 = vld [vmem:[#allocation2 + $0x28] sm:$0xff]
  %v174 = vld [vmem:[#allocation2 + $0x30] sm:$0xff]
  %v175 = vld [vmem:[#allocation2 + $0x38] sm:$0xff]
  %v176 = vadd.f32 %v169, %v120
  %v177 = vadd.f32 %v170, %v122
  %v178 = vadd.f32 %v171, %v125
  %v179 = vadd.f32 %v172, %v127
  %v180 = vadd.f32 %v173, %v130
  %v181 = vadd.f32 %v174, %v132
  %v182 = vadd.f32 %v175, %v135
  %183 = vst [vmem:[#allocation2 + $0x8] sm:$0xff] %v176
  %184 = vst [vmem:[#allocation2 + $0x10] sm:$0xff] %v177
  %185 = vst [vmem:[#allocation2 + $0x18] sm:$0xff] %v178
  %186 = vst [vmem:[#allocation2 + $0x20] sm:$0xff] %v179
  %187 = vst [vmem:[#allocation2 + $0x28] sm:$0xff] %v180
  %188 = vst [vmem:[#allocation2 + $0x30] sm:$0xff] %v181
  %189 = vst [vmem:[#allocation2 + $0x38] sm:$0xff] %v182
  %v190 = vld [vmem:[#allocation2] sm:$0xff]
  %v191 = vld [vmem:[#allocation2 + $0x8] sm:$0xff]
  %v192 = vld [vmem:[#allocation2 + $0x10] sm:$0xff]
  %v193 = vld [vmem:[#allocation2 + $0x18] sm:$0xff]
  %v194 = vld [vmem:[#allocation2 + $0x20] sm:$0xff]
  %v195 = vld [vmem:[#allocation2 + $0x28] sm:$0xff]
  %v196 = vld [vmem:[#allocation2 + $0x30] sm:$0xff]
  %v197 = vadd.f32 %v190, %v122
  %v198 = vadd.f32 %v191, %v125
  %v199 = vadd.f32 %v192, %v127
  %v200 = vadd.f32 %v193, %v130
  %v201 = vadd.f32 %v194, %v132
  %v202 = vadd.f32 %v195, %v135
  %v203 = vadd.f32 %v196, %v137
  %204 = vst [vmem:[#allocation2] sm:$0xff] %v197
  %205 = vst [vmem:[#allocation2 + $0x8] sm:$0xff] %v198
  %206 = vst [vmem:[#allocation2 + $0x10] sm:$0xff] %v199
  %207 = vst [vmem:[#allocation2 + $0x18] sm:$0xff] %v200
  %208 = vst [vmem:[#allocation2 + $0x20] sm:$0xff] %v201
  %209 = vst [vmem:[#allocation2 + $0x28] sm:$0xff] %v202
  %210 = vst [vmem:[#allocation2 + $0x30] sm:$0xff] %v203
  %v211 = vld [vmem:[#allocation2] sm:$0xff]
  %v212 = vld [vmem:[#allocation2 + $0x8] sm:$0xff]
  %v213 = vld [vmem:[#allocation2 + $0x10] sm:$0xff]
  %v214 = vld [vmem:[#allocation2 + $0x18] sm:$0xff]
  %v215 = vld [vmem:[#allocation2 + $0x20] sm:$0xff]
  %v216 = vld [vmem:[#allocation2 + $0x28] sm:$0xff]
  %v217 = vld [vmem:[#allocation2 + $0x30] sm:$0xff]
  %v218 = vld [vmem:[#allocation2 + $0x38] sm:$0xff]
  %v219 = vpack.c.bf16 %v212, %v211
  %v220 = vpack.c.bf16 %v214, %v213
  %v221 = vpack.c.bf16 %v216, %v215
  %v222 = vpack.c.bf16 %v218, %v217
  %v223 = vld [vmem:[%s4] sm:$0xf]
  %v224 = vld [vmem:[%s4 + $0x4] sm:$0xf]
  %v225 = vld [vmem:[%s4 + $0x8] sm:$0xf]
  %v226 = vld [vmem:[%s4 + $0xc] sm:$0xf]
  %v227 = vld [vmem:[%s4 + $0x10] sm:$0xf]
  %v228 = vld [vmem:[%s4 + $0x14] sm:$0xf]
  %v229 = vld [vmem:[%s4 + $0x18] sm:$0xf]
  %v230 = vld [vmem:[%s4 + $0x1c] sm:$0xf]
  %v231 = vld [vmem:[%s4 + $0x20] sm:$0xf]
  %v232 = vld [vmem:[%s4 + $0x24] sm:$0xf]
  %v233 = vld [vmem:[%s4 + $0x28] sm:$0xf]
  %v234 = vld [vmem:[%s4 + $0x2c] sm:$0xf]
  %v235 = vld [vmem:[%s4 + $0x30] sm:$0xf]
  %v236 = vld [vmem:[%s4 + $0x34] sm:$0xf]
  %v237 = vld [vmem:[%s4 + $0x38] sm:$0xf]
  %v238 = vld [vmem:[%s4 + $0x3c] sm:$0xf]
  %v239 = vld [vmem:[%s5] sm:$0x1]
  %v241 = vperm.slane %v239, 0
  %v259 = vunpack.c.l.b16 %v223
  %v260 = vunpack.c.l.b16 %v224
  %v261 = vunpack.c.l.b16 %v225
  %v262 = vunpack.c.l.b16 %v226
  %v263 = vunpack.c.l.b16 %v227
  %v264 = vunpack.c.l.b16 %v228
  %v265 = vunpack.c.l.b16 %v229
  %v266 = vunpack.c.l.b16 %v230
  %v267 = vunpack.c.l.b16 %v231
  %v268 = vunpack.c.l.b16 %v232
  %v269 = vunpack.c.l.b16 %v233
  %v270 = vunpack.c.l.b16 %v234
  %v271 = vunpack.c.l.b16 %v235
  %v272 = vunpack.c.l.b16 %v236
  %v273 = vunpack.c.l.b16 %v237
  %v274 = vunpack.c.l.b16 %v238
  %v275 = vpack.c.b16 %v260, %v259
  %v276 = vpack.c.b16 %v262, %v261
  %v277 = vpack.c.b16 %v264, %v263
  %v278 = vpack.c.b16 %v266, %v265
  %v279 = vpack.c.b16 %v268, %v267
  %v280 = vpack.c.b16 %v270, %v269
  %v281 = vpack.c.b16 %v272, %v271
  %v282 = vpack.c.b16 %v274, %v273
  %291 = vmatpush.bf16.msra.mxu0 %v282
  %292 = vmatpush.bf16.msra.mxu0 %v281
  %293 = vmatpush.bf16.msra.mxu0 %v280
  %294 = vmatpush.bf16.msra.mxu0 %v279
  %295 = vmatpush.bf16.msra.mxu0 %v278
  %296 = vmatpush.bf16.msra.mxu0 %v277
  %297 = vmatpush.bf16.msra.mxu0 %v276
  %298 = vmatpush.bf16.msra.mxu0 %v275
  %299 = vmatmul.bf16.gmra.mxu0 %v219
  %v300 = vpop.f32.mrf.mxu0
  %v301 = vadd.f32 %v241, %v300
  %v302 = vpop.f32.mrf.mxu0
  %v303 = vadd.f32 %v241, %v302
  %304 = vmatmul.bf16.gmra.mxu0 %v220
  %v305 = vpop.f32.mrf.mxu0
  %v306 = vadd.f32 %v241, %v305
  %v307 = vpop.f32.mrf.mxu0
  %v308 = vadd.f32 %v241, %v307
  %309 = vmatmul.bf16.gmra.mxu0 %v221
  %v310 = vpop.f32.mrf.mxu0
  %v311 = vadd.f32 %v241, %v310
  %v312 = vpop.f32.mrf.mxu0
  %v313 = vadd.f32 %v241, %v312
  %314 = vmatmul.bf16.gmra.mxu0 %v222
  %v315 = vpop.f32.mrf.mxu0
  %v316 = vadd.f32 %v241, %v315
  %v317 = vpop.f32.mrf.mxu0
  %v318 = vadd.f32 %v241, %v317
  %319 = vdwg.mxu0
  %v320 = vmax.f32 %v301, 0.0
  %v321 = vmax.f32 %v303, 0.0
  %v322 = vmax.f32 %v306, 0.0
  %v323 = vmax.f32 %v308, 0.0
  %v324 = vmax.f32 %v311, 0.0
  %v325 = vmax.f32 %v313, 0.0
  %v326 = vmax.f32 %v316, 0.0
  %v327 = vmax.f32 %v318, 0.0
  %v328 = vadd.f32 %v320, %v321
  %v329 = vadd.f32 %v328, %v322
  %v330 = vadd.f32 %v329, %v323
  %v331 = vadd.f32 %v330, %v324
  %v332 = vadd.f32 %v331, %v325
  %v333 = vadd.f32 %v332, %v326
  %v334 = vadd.f32 %v333, %v327
  %v335 = vld [vmem:[%s6] sm:$0xff]
  %v336 = vld [vmem:[%s6 + $0x8] sm:$0xff]
  %v337 = vld [vmem:[%s6 + $0x10] sm:$0xff]
  %v338 = vld [vmem:[%s6 + $0x18] sm:$0xff]
  %v339 = vld [vmem:[%s6 + $0x20] sm:$0xff]
  %v340 = vld [vmem:[%s6 + $0x28] sm:$0xff]
  %v341 = vld [vmem:[%s6 + $0x30] sm:$0xff]
  %v342 = vld [vmem:[%s6 + $0x38] sm:$0xff]
  %v343 = vld [vmem:[%s6 + $0x40] sm:$0xff]
  %v344 = vld [vmem:[%s6 + $0x48] sm:$0xff]
  %v345 = vld [vmem:[%s6 + $0x50] sm:$0xff]
  %v346 = vld [vmem:[%s6 + $0x58] sm:$0xff]
  %v347 = vld [vmem:[%s6 + $0x60] sm:$0xff]
  %v348 = vld [vmem:[%s6 + $0x68] sm:$0xff]
  %v349 = vld [vmem:[%s6 + $0x70] sm:$0xff]
  %v350 = vld [vmem:[%s6 + $0x78] sm:$0xff]
  %v351 = vld [vmem:[%s7] sm:$0x1]
  %v352 = vmul.f32 %v351, 8.0
  %v354 = vperm.slane %v352, 0
  %356 = vmatpush.msra.mxu0 %v350
  %357 = vmatpush.msra.mxu0 %v349
  %358 = vmatpush.msra.mxu0 %v348
  %359 = vmatpush.msra.mxu0 %v347
  %360 = vmatpush.msra.mxu0 %v346
  %361 = vmatpush.msra.mxu0 %v345
  %362 = vmatpush.msra.mxu0 %v344
  %363 = vmatpush.msra.mxu0 %v343
  %364 = vmatpush.msra.mxu0 %v342
  %365 = vmatpush.msra.mxu0 %v341
  %366 = vmatpush.msra.mxu0 %v340
  %367 = vmatpush.msra.mxu0 %v339
  %368 = vmatpush.msra.mxu0 %v338
  %369 = vmatpush.msra.mxu0 %v337
  %370 = vmatpush.msra.mxu0 %v336
  %371 = vmatpush.msra.mxu0 %v335
  %372 = vmatmul.f32.gmra.mxu0 %v334
  %v373 = vpop.f32.mrf.mxu0
  %v374 = vadd.f32 %v354, %v373
  %375 = vdwg.mxu0
  %376 = vst [vmem:[%s8] sm:$0xff] %v374
  // Predicated region
  $region34: #{custom_gin_conv.1} parent=0 // pred_check
    _
  $region35: #{custom_gin_conv.1} parent=0 // pred_check_branch
    %378 = sbr.rel (0) target = $region37
  $region36: #{custom_gin_conv.1} parent=0 // pred_region
    _
  $region37: #{custom_gin_conv.1} parent=0 // pred_fallthru
    _
  // Predicated region
  $region38: #{custom_gin_conv.1} parent=0 // pred_check
    _
  $region39: #{custom_gin_conv.1} parent=0 // pred_check_branch
    %380 = sbr.rel (0) target = $region41
  $region40: #{custom_gin_conv.1} parent=0 // pred_region
    _
  $region41: #{custom_gin_conv.1} parent=0 // pred_fallthru
    _

</llo_original>
